<compile_context>
chip_gen: v7x
topology: tpu7x:2x2x1
jax: 0.10.0
libtpu: 0.0.40
codegen_flags: <defaults>
</compile_context>

<pallas_src>
import functools

import jax
import jax.numpy as jnp
from jax.experimental import pallas as pl
from jax.experimental.pallas import tpu as pltpu

CURVATURE = -1.0   # sectional curvature k (negative -> hyperbolic)
MARGIN = 1.0       # triplet margin
EPS = 1e-7         # clamp for artanh stability (as geoopt does)
DEN_EPS = 1e-15    # clamp for the mobius-add denominator


def _hyper_dist_rows(xy, x2, y2, d2, k):
    """Hyperbolic distance per row from row reductions only.

    xy = <x, y>, x2 = ||x||^2, y2 = ||y||^2, d2 = ||x - y||^2, all (TB, 1).
    Cancellation-safe closed form of ||mobius_add_k(-x, y)||.
    """
    beta = 1.0 + k * x2
    bracket = beta * beta + 2.0 * k * beta * (xy - x2) + (k * k) * d2 * x2
    num_sq = d2 * jnp.maximum(bracket, 0.0)             # >= 0 mathematically
    den = 1.0 + 2.0 * k * xy + (k * k) * x2 * y2
    den = jnp.maximum(den, DEN_EPS)                     # geoopt-style clamp
    ma_norm = jnp.sqrt(num_sq) / den
    sk = float((-k) ** 0.5)                             # compile-time constant
    z = jnp.clip(sk * ma_norm, 0.0, 1.0 - EPS)
    # artanh(z) = 0.5 * (log1p(z) - log1p(-z))  -- EUP, precise near z ~ 0
    artanh = 0.5 * (jnp.log1p(z) - jnp.log1p(-z))
    return (2.0 / sk) * artanh                          # (TB, 1)


def _triplet_kernel(a_ref, p_ref, n_ref, out_ref, *,
                    k, margin, batch, tile, num_tiles, needs_mask):
    """Per-tile partial sum of relu(pos_d - neg_d + margin)."""
    a = a_ref[...].astype(jnp.float32)   # (TB, D)
    p = p_ref[...].astype(jnp.float32)   # (TB, D)
    n = n_ref[...].astype(jnp.float32)   # (TB, D)

    # Row reductions -- the only (TB, D)-width work in the kernel.
    x2 = jnp.sum(a * a, axis=-1, keepdims=True)          # shared anchor norm

    py = jnp.sum(a * p, axis=-1, keepdims=True)
    p2 = jnp.sum(p * p, axis=-1, keepdims=True)
    dp = a - p
    dp2 = jnp.sum(dp * dp, axis=-1, keepdims=True)

    ny = jnp.sum(a * n, axis=-1, keepdims=True)
    n2 = jnp.sum(n * n, axis=-1, keepdims=True)
    dn = a - n
    dn2 = jnp.sum(dn * dn, axis=-1, keepdims=True)

    pos_d = _hyper_dist_rows(py, x2, p2, dp2, k)          # (TB, 1)
    neg_d = _hyper_dist_rows(ny, x2, n2, dn2, k)          # (TB, 1)

    losses = jnp.maximum(pos_d - neg_d + margin, 0.0)     # (TB, 1)

    if needs_mask:
        # Padding exists only on the last tile; keep steady-state tiles clean.
        i = pl.program_id(0)

        @pl.when(i == num_tiles - 1)
        def _():
            row = i * tile + jax.lax.broadcasted_iota(jnp.int32, losses.shape, 0)
            # Select (not multiply): NaN/Inf from padded rows never propagates.
            masked = jnp.where(row < batch, losses, 0.0)
            out_ref[...] = jnp.broadcast_to(jnp.sum(masked), out_ref.shape)

        @pl.when(i != num_tiles - 1)
        def _():
            out_ref[...] = jnp.broadcast_to(jnp.sum(losses), out_ref.shape)
    else:
        out_ref[...] = jnp.broadcast_to(jnp.sum(losses), out_ref.shape)


def _pick_tile(B, D, itemsize):
    """Pick the batch tile size and grid length from D, dtype and chip VMEM."""
    sub = max(8, 32 // itemsize)                 # sublane multiple: 8 f32, 16 bf16

    def rup(x):
        return ((x + sub - 1) // sub) * sub

    try:
        vmem_cap = int(pltpu.get_tpu_info().vmem_capacity_bytes)
    except Exception:
        vmem_cap = 64 << 20                      # conservative (v7x per-TC VMEM)

    # Per-row VMEM cost: 3 inputs x 2 pipeline buffers + ~6 f32-wide temporaries
    # (upcasts + diffs).  Keep the whole footprint inside ~70% of VMEM.
    per_row = D * (6 * itemsize + 6 * 4)
    tb_vmem_cap = max(sub, (int(0.70 * vmem_cap) - (2 << 20)) // max(per_row, 1))

    # Target ~2 MiB per input block (per-step overhead ~0.35 us; 2 MiB blocks
    # measured at >=85% of HBM roofline), never below 256 rows.
    tb_target = max(256, (2 << 20) // max(D * itemsize, 1))

    # Keep >= 2 tiles whenever possible so v7x megacore shards across both TCs.
    tb_split = max(sub, (B + 1) // 2)

    TB = rup(min(tb_target, tb_vmem_cap, tb_split))
    TB = min(TB, rup(B))
    TB = max(TB, sub)
    num_tiles = (B + TB - 1) // TB
    return TB, num_tiles, vmem_cap


def hyperbolic_triplet_loss(anchors, positives, negatives, *,
                            curvature=CURVATURE, margin=MARGIN,
                            reduction="mean", cast_to_bf16=False, tile=None):
    """Pallas-backed equivalent of HyperbolicTripletLoss (reduction mean/sum).

    cast_to_bf16: optionally feed bf16 to the kernel (halves HBM traffic; the
    kernel upcasts to f32 before all reductions).  Off by default to preserve
    the module's f32 input semantics.
    """
    assert anchors.shape == positives.shape == negatives.shape
    assert reduction in ("mean", "sum"), "reduction='none' not supported"
    B, D = anchors.shape

    if cast_to_bf16:
        anchors = anchors.astype(jnp.bfloat16)
        positives = positives.astype(jnp.bfloat16)
        negatives = negatives.astype(jnp.bfloat16)

    itemsize = jnp.dtype(anchors.dtype).itemsize
    TB, num_tiles, vmem_cap = _pick_tile(B, D, itemsize)
    if tile is not None:                       # manual override (tests/tuning)
        sub = max(8, 32 // itemsize)
        TB = max(sub, ((int(tile) + sub - 1) // sub) * sub)
        TB = min(TB, ((B + sub - 1) // sub) * sub)
        num_tiles = (B + TB - 1) // TB
    needs_mask = (num_tiles * TB != B)

    # Scoped-VMEM budget: 3 inputs x 2 buffers + f32 temporaries + slack.
    block_bytes = TB * D * itemsize
    est = 6 * block_bytes + 6 * TB * D * 4 + (1 << 20)
    vmem_limit = int(min(int(0.9 * vmem_cap), max(est, 16 << 20)))

    kernel = functools.partial(
        _triplet_kernel, k=float(curvature), margin=float(margin),
        batch=B, tile=TB, num_tiles=num_tiles, needs_mask=needs_mask)

    partials = pl.pallas_call(
        kernel,
        out_shape=jax.ShapeDtypeStruct((num_tiles, 128), jnp.float32),
        grid=(num_tiles,),
        in_specs=[
            pl.BlockSpec((TB, D), lambda i: (i, 0)),
            pl.BlockSpec((TB, D), lambda i: (i, 0)),
            pl.BlockSpec((TB, D), lambda i: (i, 0)),
        ],
        # Lane-dense output row: unmasked vst instead of (1,1) masked store.
        out_specs=pl.BlockSpec((1, 128), lambda i: (i, 0)),
        compiler_params=pltpu.CompilerParams(
            dimension_semantics=("parallel",),
            vmem_limit_bytes=vmem_limit),
        cost_estimate=pl.CostEstimate(
            flops=16 * B * D,
            transcendentals=6 * B,
            bytes_accessed=3 * B * D * itemsize + num_tiles * 128 * 4,
        ),
    )(anchors, positives, negatives)

    total = jnp.sum(partials[:, 0])
    if reduction == "mean":
        return total / B
    return total


def _reference(anchors, positives, negatives, curvature=CURVATURE, margin=MARGIN):
    """Pure-JAX reference using the *explicit* (B, D) Mobius addition.

    Kept in the original full-width form so it independently checks the
    closed-form algebra used inside the kernel.
    """
    k = float(curvature)

    def dist(x, y):
        a = -x
        ay = jnp.sum(a * y, axis=-1, keepdims=True)
        a2 = jnp.sum(a * a, axis=-1, keepdims=True)
        y2 = jnp.sum(y * y, axis=-1, keepdims=True)
        num = (1.0 - 2.0 * k * ay - k * y2) * a + (1.0 + k * a2) * y
        den = 1.0 - 2.0 * k * ay + (k * k) * a2 * y2
        ma = num / den
        ma_norm = jnp.sqrt(jnp.sum(ma * ma, axis=-1, keepdims=True) + 1e-15)
        sk = (-k) ** 0.5
        z = jnp.clip(sk * ma_norm, -1.0 + EPS, 1.0 - EPS)
        artanh = 0.5 * jnp.log((1.0 + z) / (1.0 - z))
        return (2.0 / sk) * artanh

    a = anchors.astype(jnp.float32)
    p = positives.astype(jnp.float32)
    n = negatives.astype(jnp.float32)
    pos_d = dist(a, p)[:, 0]
    neg_d = dist(a, n)[:, 0]
    return jnp.mean(jnp.maximum(pos_d - neg_d + margin, 0.0))


def _sample_ball(key, shape, scale=0.3):
    v = jax.random.normal(key, shape, dtype=jnp.float32)
    return scale * v / (1.0 + jnp.linalg.norm(v, axis=-1, keepdims=True))


if __name__ == "__main__":
    # --- Test 1: small batch, single tile -------------------------------
    B, D = 8, 32
    ka, kp, kn = jax.random.split(jax.random.PRNGKey(0), 3)
    anchors = _sample_ball(ka, (B, D))
    positives = _sample_ball(kp, (B, D))
    negatives = _sample_ball(kn, (B, D))

    loss = hyperbolic_triplet_loss(anchors, positives, negatives)
    jax.block_until_ready(loss)
    ref = _reference(anchors, positives, negatives)
    assert jnp.allclose(loss, ref, rtol=1e-5, atol=1e-5), (loss, ref)

    # --- Test 2: multi-tile / masked-remainder path (auto tile picker) ---
    B2 = 20
    k2a, k2p, k2n = jax.random.split(jax.random.PRNGKey(1), 3)
    a2_ = _sample_ball(k2a, (B2, D))
    p2_ = _sample_ball(k2p, (B2, D))
    n2_ = _sample_ball(k2n, (B2, D))
    loss2 = hyperbolic_triplet_loss(a2_, p2_, n2_)    # TB=16 -> 2 tiles, last masked
    jax.block_until_ready(loss2)
    ref2 = _reference(a2_, p2_, n2_)
    assert jnp.allclose(loss2, ref2, rtol=1e-5, atol=1e-5), (loss2, ref2)

    # --- Test 3: near-duplicate anchor/positive pairs (cancellation) -----
    B3 = 16
    k3a, k3d, k3n = jax.random.split(jax.random.PRNGKey(2), 3)
    a3_ = _sample_ball(k3a, (B3, D))
    p3_ = a3_ + 1e-4 * _sample_ball(k3d, (B3, D))     # almost identical pair
    n3_ = _sample_ball(k3n, (B3, D))
    loss3 = hyperbolic_triplet_loss(a3_, p3_, n3_)
    jax.block_until_ready(loss3)
    ref3 = _reference(a3_, p3_, n3_)
    assert jnp.allclose(loss3, ref3, rtol=1e-5, atol=1e-5), (loss3, ref3)

    # --- Test 4: bf16 input path (vs reference on bf16-rounded inputs) ---
    a4 = anchors.astype(jnp.bfloat16).astype(jnp.float32)
    p4 = positives.astype(jnp.bfloat16).astype(jnp.float32)
    n4 = negatives.astype(jnp.bfloat16).astype(jnp.float32)
    loss4 = hyperbolic_triplet_loss(anchors, positives, negatives, cast_to_bf16=True)
    jax.block_until_ready(loss4)
    ref4 = _reference(a4, p4, n4)
    assert jnp.allclose(loss4, ref4, rtol=1e-4, atol=1e-4), (loss4, ref4)

    print("KERNEL_OK")
</pallas_src>

<mosaic_0001>
module attributes {stable_mosaic.version = 11 : i64} {
  func.func @_triplet_kernel(%arg0: i32, %arg1: memref<8x32xf32, #tpu.memory_space<vmem>>, %arg2: memref<8x32xf32, #tpu.memory_space<vmem>>, %arg3: memref<8x32xf32, #tpu.memory_space<vmem>>, %arg4: memref<1x128xf32, #tpu.memory_space<vmem>>) attributes {dimension_semantics = [#tpu.dimension_semantics<parallel>], iteration_bounds = array<i64: 1>, scalar_prefetch = 0 : i64, scratch_operands = 0 : i64, tpu.core_type = #tpu.core_type<tc>, window_params = [{transform_indices = @transform_0, window_bounds = array<i64: 8, 32>}, {transform_indices = @transform_1, window_bounds = array<i64: 8, 32>}, {transform_indices = @transform_2, window_bounds = array<i64: 8, 32>}, {transform_indices = @transform_3, window_bounds = array<i64: 1, 128>}]} {
    %c0 = arith.constant 0 : index
    %c0_0 = arith.constant 0 : index
    %0 = vector.load %arg1[%c0, %c0_0] : memref<8x32xf32, #tpu.memory_space<vmem>>, vector<8x32xf32>
    %c0_1 = arith.constant 0 : index
    %c0_2 = arith.constant 0 : index
    %1 = vector.load %arg2[%c0_1, %c0_2] : memref<8x32xf32, #tpu.memory_space<vmem>>, vector<8x32xf32>
    %c0_3 = arith.constant 0 : index
    %c0_4 = arith.constant 0 : index
    %2 = vector.load %arg3[%c0_3, %c0_4] : memref<8x32xf32, #tpu.memory_space<vmem>>, vector<8x32xf32>
    %3 = arith.mulf %0, %0 : vector<8x32xf32>
    %cst = arith.constant dense<0.000000e+00> : vector<8xf32>
    %4 = vector.multi_reduction <add>, %3, %cst [1] : vector<8x32xf32> to vector<8xf32>
    %5 = vector.shape_cast %4 : vector<8xf32> to vector<8x1xf32>
    %6 = arith.mulf %0, %1 : vector<8x32xf32>
    %cst_5 = arith.constant dense<0.000000e+00> : vector<8xf32>
    %7 = vector.multi_reduction <add>, %6, %cst_5 [1] : vector<8x32xf32> to vector<8xf32>
    %8 = vector.shape_cast %7 : vector<8xf32> to vector<8x1xf32>
    %9 = arith.mulf %1, %1 : vector<8x32xf32>
    %cst_6 = arith.constant dense<0.000000e+00> : vector<8xf32>
    %10 = vector.multi_reduction <add>, %9, %cst_6 [1] : vector<8x32xf32> to vector<8xf32>
    %11 = vector.shape_cast %10 : vector<8xf32> to vector<8x1xf32>
    %12 = arith.subf %0, %1 : vector<8x32xf32>
    %13 = arith.mulf %12, %12 : vector<8x32xf32>
    %cst_7 = arith.constant dense<0.000000e+00> : vector<8xf32>
    %14 = vector.multi_reduction <add>, %13, %cst_7 [1] : vector<8x32xf32> to vector<8xf32>
    %15 = vector.shape_cast %14 : vector<8xf32> to vector<8x1xf32>
    %16 = arith.mulf %0, %2 : vector<8x32xf32>
    %cst_8 = arith.constant dense<0.000000e+00> : vector<8xf32>
    %17 = vector.multi_reduction <add>, %16, %cst_8 [1] : vector<8x32xf32> to vector<8xf32>
    %18 = vector.shape_cast %17 : vector<8xf32> to vector<8x1xf32>
    %19 = arith.mulf %2, %2 : vector<8x32xf32>
    %cst_9 = arith.constant dense<0.000000e+00> : vector<8xf32>
    %20 = vector.multi_reduction <add>, %19, %cst_9 [1] : vector<8x32xf32> to vector<8xf32>
    %21 = vector.shape_cast %20 : vector<8xf32> to vector<8x1xf32>
    %22 = arith.subf %0, %2 : vector<8x32xf32>
    %23 = arith.mulf %22, %22 : vector<8x32xf32>
    %cst_10 = arith.constant dense<0.000000e+00> : vector<8xf32>
    %24 = vector.multi_reduction <add>, %23, %cst_10 [1] : vector<8x32xf32> to vector<8xf32>
    %25 = vector.shape_cast %24 : vector<8xf32> to vector<8x1xf32>
    %cst_11 = arith.constant -1.000000e+00 : f32
    %26 = vector.broadcast %cst_11 : f32 to vector<8x1xf32>
    %27 = arith.mulf %26, %5 : vector<8x1xf32>
    %cst_12 = arith.constant 1.000000e+00 : f32
    %28 = vector.broadcast %cst_12 : f32 to vector<8x1xf32>
    %29 = arith.addf %28, %27 : vector<8x1xf32>
    %30 = arith.mulf %29, %29 : vector<8x1xf32>
    %cst_13 = arith.constant -2.000000e+00 : f32
    %31 = vector.broadcast %cst_13 : f32 to vector<8x1xf32>
    %32 = arith.mulf %31, %29 : vector<8x1xf32>
    %33 = arith.subf %8, %5 : vector<8x1xf32>
    %34 = arith.mulf %32, %33 : vector<8x1xf32>
    %35 = arith.addf %30, %34 : vector<8x1xf32>
    %cst_14 = arith.constant 1.000000e+00 : f32
    %36 = vector.broadcast %cst_14 : f32 to vector<8x1xf32>
    %37 = arith.mulf %36, %15 : vector<8x1xf32>
    %38 = arith.mulf %37, %5 : vector<8x1xf32>
    %39 = arith.addf %35, %38 : vector<8x1xf32>
    %cst_15 = arith.constant 0.000000e+00 : f32
    %40 = vector.broadcast %cst_15 : f32 to vector<8x1xf32>
    %41 = arith.maximumf %39, %40 : vector<8x1xf32>
    %42 = arith.mulf %15, %41 : vector<8x1xf32>
    %cst_16 = arith.constant -2.000000e+00 : f32
    %43 = vector.broadcast %cst_16 : f32 to vector<8x1xf32>
    %44 = arith.mulf %43, %8 : vector<8x1xf32>
    %cst_17 = arith.constant 1.000000e+00 : f32
    %45 = vector.broadcast %cst_17 : f32 to vector<8x1xf32>
    %46 = arith.addf %45, %44 : vector<8x1xf32>
    %cst_18 = arith.constant 1.000000e+00 : f32
    %47 = vector.broadcast %cst_18 : f32 to vector<8x1xf32>
    %48 = arith.mulf %47, %5 : vector<8x1xf32>
    %49 = arith.mulf %48, %11 : vector<8x1xf32>
    %50 = arith.addf %46, %49 : vector<8x1xf32>
    %cst_19 = arith.constant 1.000000e-15 : f32
    %51 = vector.broadcast %cst_19 : f32 to vector<8x1xf32>
    %52 = arith.maximumf %50, %51 : vector<8x1xf32>
    %53 = math.sqrt %42 : vector<8x1xf32>
    %54 = arith.divf %53, %52 : vector<8x1xf32>
    %cst_20 = arith.constant 1.000000e+00 : f32
    %55 = vector.broadcast %cst_20 : f32 to vector<8x1xf32>
    %56 = arith.mulf %55, %54 : vector<8x1xf32>
    %cst_21 = arith.constant 0.000000e+00 : f32
    %cst_22 = arith.constant 0.99999988 : f32
    %57 = vector.broadcast %cst_21 : f32 to vector<8x1xf32>
    %58 = arith.maximumf %57, %56 : vector<8x1xf32>
    %59 = vector.broadcast %cst_22 : f32 to vector<8x1xf32>
    %60 = arith.minimumf %59, %58 : vector<8x1xf32>
    %61 = math.log1p %60 : vector<8x1xf32>
    %cst_23 = arith.constant 0.000000e+00 : f32
    %62 = vector.broadcast %cst_23 : f32 to vector<8x1xf32>
    %63 = arith.subf %62, %60 : vector<8x1xf32>
    %64 = math.log1p %63 : vector<8x1xf32>
    %65 = arith.subf %61, %64 : vector<8x1xf32>
    %cst_24 = arith.constant 5.000000e-01 : f32
    %66 = vector.broadcast %cst_24 : f32 to vector<8x1xf32>
    %67 = arith.mulf %66, %65 : vector<8x1xf32>
    %cst_25 = arith.constant 2.000000e+00 : f32
    %68 = vector.broadcast %cst_25 : f32 to vector<8x1xf32>
    %69 = arith.mulf %68, %67 : vector<8x1xf32>
    %cst_26 = arith.constant -1.000000e+00 : f32
    %70 = vector.broadcast %cst_26 : f32 to vector<8x1xf32>
    %71 = arith.mulf %70, %5 : vector<8x1xf32>
    %cst_27 = arith.constant 1.000000e+00 : f32
    %72 = vector.broadcast %cst_27 : f32 to vector<8x1xf32>
    %73 = arith.addf %72, %71 : vector<8x1xf32>
    %74 = arith.mulf %73, %73 : vector<8x1xf32>
    %cst_28 = arith.constant -2.000000e+00 : f32
    %75 = vector.broadcast %cst_28 : f32 to vector<8x1xf32>
    %76 = arith.mulf %75, %73 : vector<8x1xf32>
    %77 = arith.subf %18, %5 : vector<8x1xf32>
    %78 = arith.mulf %76, %77 : vector<8x1xf32>
    %79 = arith.addf %74, %78 : vector<8x1xf32>
    %cst_29 = arith.constant 1.000000e+00 : f32
    %80 = vector.broadcast %cst_29 : f32 to vector<8x1xf32>
    %81 = arith.mulf %80, %25 : vector<8x1xf32>
    %82 = arith.mulf %81, %5 : vector<8x1xf32>
    %83 = arith.addf %79, %82 : vector<8x1xf32>
    %cst_30 = arith.constant 0.000000e+00 : f32
    %84 = vector.broadcast %cst_30 : f32 to vector<8x1xf32>
    %85 = arith.maximumf %83, %84 : vector<8x1xf32>
    %86 = arith.mulf %25, %85 : vector<8x1xf32>
    %cst_31 = arith.constant -2.000000e+00 : f32
    %87 = vector.broadcast %cst_31 : f32 to vector<8x1xf32>
    %88 = arith.mulf %87, %18 : vector<8x1xf32>
    %cst_32 = arith.constant 1.000000e+00 : f32
    %89 = vector.broadcast %cst_32 : f32 to vector<8x1xf32>
    %90 = arith.addf %89, %88 : vector<8x1xf32>
    %cst_33 = arith.constant 1.000000e+00 : f32
    %91 = vector.broadcast %cst_33 : f32 to vector<8x1xf32>
    %92 = arith.mulf %91, %5 : vector<8x1xf32>
    %93 = arith.mulf %92, %21 : vector<8x1xf32>
    %94 = arith.addf %90, %93 : vector<8x1xf32>
    %cst_34 = arith.constant 1.000000e-15 : f32
    %95 = vector.broadcast %cst_34 : f32 to vector<8x1xf32>
    %96 = arith.maximumf %94, %95 : vector<8x1xf32>
    %97 = math.sqrt %86 : vector<8x1xf32>
    %98 = arith.divf %97, %96 : vector<8x1xf32>
    %cst_35 = arith.constant 1.000000e+00 : f32
    %99 = vector.broadcast %cst_35 : f32 to vector<8x1xf32>
    %100 = arith.mulf %99, %98 : vector<8x1xf32>
    %cst_36 = arith.constant 0.000000e+00 : f32
    %cst_37 = arith.constant 0.99999988 : f32
    %101 = vector.broadcast %cst_36 : f32 to vector<8x1xf32>
    %102 = arith.maximumf %101, %100 : vector<8x1xf32>
    %103 = vector.broadcast %cst_37 : f32 to vector<8x1xf32>
    %104 = arith.minimumf %103, %102 : vector<8x1xf32>
    %105 = math.log1p %104 : vector<8x1xf32>
    %cst_38 = arith.constant 0.000000e+00 : f32
    %106 = vector.broadcast %cst_38 : f32 to vector<8x1xf32>
    %107 = arith.subf %106, %104 : vector<8x1xf32>
    %108 = math.log1p %107 : vector<8x1xf32>
    %109 = arith.subf %105, %108 : vector<8x1xf32>
    %cst_39 = arith.constant 5.000000e-01 : f32
    %110 = vector.broadcast %cst_39 : f32 to vector<8x1xf32>
    %111 = arith.mulf %110, %109 : vector<8x1xf32>
    %cst_40 = arith.constant 2.000000e+00 : f32
    %112 = vector.broadcast %cst_40 : f32 to vector<8x1xf32>
    %113 = arith.mulf %112, %111 : vector<8x1xf32>
    %114 = arith.subf %69, %113 : vector<8x1xf32>
    %cst_41 = arith.constant 1.000000e+00 : f32
    %115 = vector.broadcast %cst_41 : f32 to vector<8x1xf32>
    %116 = arith.addf %114, %115 : vector<8x1xf32>
    %cst_42 = arith.constant 0.000000e+00 : f32
    %117 = vector.broadcast %cst_42 : f32 to vector<8x1xf32>
    %118 = arith.maximumf %116, %117 : vector<8x1xf32>
    %119 = vector.shape_cast %118 : vector<8x1xf32> to vector<1x8x1xf32>
    %cst_43 = arith.constant dense<0.000000e+00> : vector<1xf32>
    %120 = vector.multi_reduction <add>, %119, %cst_43 [1, 2] : vector<1x8x1xf32> to vector<1xf32>
    %121 = vector.shape_cast %120 : vector<1xf32> to vector<1x1x1xf32>
    %122 = vector.extract %121[0, 0, 0] : f32 from vector<1x1x1xf32>
    %123 = vector.broadcast %122 : f32 to vector<1x128xf32>
    %c0_44 = arith.constant 0 : index
    %c0_45 = arith.constant 0 : index
    %124 = vector.load %arg4[%c0_44, %c0_45] : memref<1x128xf32, #tpu.memory_space<vmem>>, vector<1x128xf32>
    tpu.vector_store %arg4[%c0_44, %c0_45], %123 {strides = array<i32>} : memref<1x128xf32, #tpu.memory_space<vmem>>, vector<1x128xf32>,
    return
  }
  func.func @transform_0(%arg0: i32) -> (i32, i32) {
    %c0_i32 = arith.constant 0 : i32
    %c0_i32_0 = arith.constant 0 : i32
    return %arg0, %c0_i32 : i32, i32
  }
  func.func @transform_1(%arg0: i32) -> (i32, i32) {
    %c0_i32 = arith.constant 0 : i32
    %c0_i32_0 = arith.constant 0 : i32
    return %arg0, %c0_i32 : i32, i32
  }
  func.func @transform_2(%arg0: i32) -> (i32, i32) {
    %c0_i32 = arith.constant 0 : i32
    %c0_i32_0 = arith.constant 0 : i32
    return %arg0, %c0_i32 : i32, i32
  }
  func.func @transform_3(%arg0: i32) -> (i32, i32) {
    %c0_i32 = arith.constant 0 : i32
    %c0_i32_0 = arith.constant 0 : i32
    return %arg0, %c0_i32 : i32, i32
  }
}

</mosaic_0001>

<llo_original>
// kernel: tpu_custom_call.1
$region0: #{tpu_custom_call.1}
  #allocation0 [shape = 'u32[]', space=smem, size = 0x4, offset = 0x4, fixed_abs, tag = 'smem constant byte address 0x4 - core index']
  #allocation1 [shape = 'u32[144,128]{1,0:T(1,128)}', space=vmem, size = 0x12000, scoped, tag = 'internal scratch']
  %s0 = inlined_call_operand.hbm [shape: f32[8,32], index: 0, kind: input, shape index: {}]
  %s1 = inlined_call_operand.hbm [shape: f32[8,32], index: 1, kind: input, shape index: {}]
  %s2 = inlined_call_operand.hbm [shape: f32[8,32], index: 2, kind: input, shape index: {}]
  %s3 = inlined_call_operand.hbm [shape: f32[1,128], index: 3, kind: output, shape index: {}]
  %s4 = sld [smem:[#allocation0]]
  $region34: #{tpu_custom_call.1} parent=0
    _
  %s6 = ssub.s32 1, %s4
  %s7 = scalar_select 0, %s6, %s4
  $region1: #{tpu_custom_call.1} parent=0
    #allocation2 [shape = 'u8[4096]{0}', space=vmem, size = 0x1000, scoped, tag = 'input window, operand 0, single buffered']
    #allocation3 [shape = 's32[1]{0}', space=sflag, size = 0x4, scoped, tag = 'scoped memory for tpu_custom_call.1']
    #allocation4 [shape = 's32[1]{0}', space=sflag, size = 0x4, scoped, tag = 'scoped memory for tpu_custom_call.1']
    #allocation5 [shape = 'u8[4096]{0}', space=vmem, size = 0x1000, scoped, tag = 'input window, operand 1, single buffered']
    #allocation6 [shape = 's32[1]{0}', space=sflag, size = 0x4, scoped, tag = 'scoped memory for tpu_custom_call.1']
    #allocation7 [shape = 'u8[4096]{0}', space=vmem, size = 0x1000, scoped, tag = 'input window, operand 2, single buffered']
    #allocation8 [shape = 'u8[512]{0}', space=vmem, size = 0x400, scoped, tag = 'output window, operand 0, single buffered']
    %8 = vsyncpa [#allocation3], 0
    %9 = vsyncpa [#allocation6], 0
    %10 = vsyncpa [#allocation4], 0
    // Predicated region
    $region2: #{tpu_custom_call.1} parent=1 // pred_check
      _
    $region3: #{tpu_custom_call.1} parent=1 // pred_check_branch
      %12 = sbr.rel (0) target = $region5
    $region4: #{tpu_custom_call.1} parent=1 // pred_region
      %s14 = ssub.s32 128, 128
      %15 = vsyncadd [#allocation3], %s14
      %s17 = sshll.u32 [#allocation2], 4
      %s18 = int_to_ptr.vmem [resolvable:$true] %s17
      %20 = dma.hbm_to_vmem [thread:$0]  %s0, 128, %s18, [#allocation3]
    $region5: #{tpu_custom_call.1} parent=1 // pred_fallthru
      _
    // Predicated region
    $region6: #{tpu_custom_call.1} parent=1 // pred_check
      _
    $region7: #{tpu_custom_call.1} parent=1 // pred_check_branch
      %22 = sbr.rel (0) target = $region9
    $region8: #{tpu_custom_call.1} parent=1 // pred_region
      %s24 = ssub.s32 128, 128
      %25 = vsyncadd [#allocation6], %s24
      %s27 = sshll.u32 [#allocation5], 4
      %s28 = int_to_ptr.vmem [resolvable:$true] %s27
      %30 = dma.hbm_to_vmem [thread:$0]  %s1, 128, %s28, [#allocation6]
    $region9: #{tpu_custom_call.1} parent=1 // pred_fallthru
      _
    // Predicated region
    $region10: #{tpu_custom_call.1} parent=1 // pred_check
      _
    $region11: #{tpu_custom_call.1} parent=1 // pred_check_branch
      %32 = sbr.rel (0) target = $region13
    $region12: #{tpu_custom_call.1} parent=1 // pred_region
      %s34 = ssub.s32 128, 128
      %35 = vsyncadd [#allocation6], %s34
      %s37 = sshll.u32 [#allocation7], 4
      %s38 = int_to_ptr.vmem [resolvable:$true] %s37
      %40 = dma.hbm_to_vmem [thread:$0]  %s2, 128, %s38, [#allocation6]
    $region13: #{tpu_custom_call.1} parent=1 // pred_fallthru
      _
    // Predicated region
    $region14: #{tpu_custom_call.1} parent=1 // pred_check
      _
    $region15: #{tpu_custom_call.1} parent=1 // pred_check_branch
      %42 = sbr.rel (0) target = $region17
    $region16: #{tpu_custom_call.1} parent=1 // pred_region
      %43 = dma.done [#allocation3], 128
    $region17: #{tpu_custom_call.1} parent=1 // pred_fallthru
      _
    // Predicated region
    $region18: #{tpu_custom_call.1} parent=1 // pred_check
      _
    $region19: #{tpu_custom_call.1} parent=1 // pred_check_branch
      %45 = sbr.rel (0) target = $region21
    $region20: #{tpu_custom_call.1} parent=1 // pred_region
      %46 = dma.done [#allocation6], 128
    $region21: #{tpu_custom_call.1} parent=1 // pred_fallthru
      _
    // Predicated region
    $region22: #{tpu_custom_call.1} parent=1 // pred_check
      _
    $region23: #{tpu_custom_call.1} parent=1 // pred_check_branch
      %48 = sbr.rel (0) target = $region25
    $region24: #{tpu_custom_call.1} parent=1 // pred_region
      %49 = dma.done [#allocation6], 128
    $region25: #{tpu_custom_call.1} parent=1 // pred_fallthru
      _
    %v50 = vld [vmem:[#allocation2] sm:$0xff]
    %v51 = vld [vmem:[#allocation5] sm:$0xff]
    %v52 = vld [vmem:[#allocation7] sm:$0xff]
    %v53 = vmul.f32 %v50, %v50
    %vm54 = vcmask 261120
    %v55 = vsel %vm54, %v53, 0.0
    %56 = vadd.xlane.f32.xlu0 %v55
    %v57 = vpop.xlane.xlu0 %56
    %v58 = vmul.f32 %v50, %v51
    %v59 = vsel %vm54, %v58, 0.0
    %60 = vadd.xlane.f32.xlu0 %v59
    %v61 = vpop.xlane.xlu0 %60
    %v62 = vmul.f32 %v51, %v51
    %v63 = vsel %vm54, %v62, 0.0
    %64 = vadd.xlane.f32.xlu0 %v63
    %v65 = vpop.xlane.xlu0 %64
    %v66 = vsub.f32 %v50, %v51
    %v67 = vmul.f32 %v66, %v66
    %v68 = vsel %vm54, %v67, 0.0
    %69 = vadd.xlane.f32.xlu0 %v68
    %v70 = vpop.xlane.xlu0 %69
    %v71 = vmul.f32 %v50, %v52
    %v72 = vsel %vm54, %v71, 0.0
    %73 = vadd.xlane.f32.xlu0 %v72
    %v74 = vpop.xlane.xlu0 %73
    %v75 = vmul.f32 %v52, %v52
    %v76 = vsel %vm54, %v75, 0.0
    %77 = vadd.xlane.f32.xlu0 %v76
    %v78 = vpop.xlane.xlu0 %77
    %v79 = vsub.f32 %v50, %v52
    %v80 = vmul.f32 %v79, %v79
    %v81 = vsel %vm54, %v80, 0.0
    %82 = vadd.xlane.f32.xlu0 %v81
    %v83 = vpop.xlane.xlu0 %82
    %v84 = vmul.f32 %v57, -1.0
    %v85 = vadd.f32 %v84, 1.0
    %v86 = vmul.f32 %v85, %v85
    %v87 = vmul.f32 %v85, -2.0
    %v88 = vsub.f32 %v61, %v57
    %v89 = vmul.f32 %v87, %v88
    %v90 = vadd.f32 %v86, %v89
    %v91 = vmul.f32 %v70, %v57
    %v92 = vadd.f32 %v90, %v91
    %v93 = vmax.f32 %v92, 0.0
    %v94 = vmul.f32 %v70, %v93
    %v95 = vmul.f32 %v61, -2.0
    %v96 = vadd.f32 %v95, 1.0
    %v97 = vmul.f32 %v57, %v65
    %v98 = vadd.f32 %v96, %v97
    %v99 = vmax.f32 %v98, 1e-15
    %v100 = vrsqrt.pop %v94
    %v101 = vmul.f32 %v94, %v100
    %vm102 = vcmp.eq.f32.partialorder %v94, inf
    %v103 = vsel %vm102, %v94, %v101
    %vm104 = vcmp.eq.f32.partialorder %v94, 0.0
    %v105 = vand.u32 %v94, 2147483648
    %v106 = vsel %vm104, %v105, %v103
    %v107 = vrcp.pop %v99
    %v108 = vmul.f32 %v106, %v107
    %v109 = vmax.f32 %v108, 0.0
    %v110 = vmin.f32 %v109, 0.9999999
    %v111 = vadd.f32 %v110, 1.0
    %v112 = vlog2.pop %v111
    %v113 = vmul.f32 %v112, 0.6931472
    %v114 = vmul.f32 -0.5, %v110
    %v115 = vadd.f32 %v114, 1.0
    %v116 = vmul.f32 %v115, %v110
    %v117 = vand.u32 2147483647, %v110
    %vm118 = vcmp.lt.f32.partialorder %v117, 0.0004427343
    %v119 = vsel %vm118, %v116, %v113
    %v120 = vsub.f32 0.0, %v110
    %v121 = vadd.f32 %v120, 1.0
    %v122 = vlog2.pop %v121
    %v123 = vmul.f32 %v122, 0.6931472
    %v124 = vmul.f32 -0.5, %v120
    %v125 = vadd.f32 %v124, 1.0
    %v126 = vmul.f32 %v125, %v120
    %v127 = vand.u32 2147483647, %v120
    %vm128 = vcmp.lt.f32.partialorder %v127, 0.0004427343
    %v129 = vsel %vm128, %v126, %v123
    %v130 = vsub.f32 %v119, %v129
    %v131 = vmul.f32 %v130, 0.5
    %v132 = vmul.f32 %v131, 2.0
    %v133 = vsub.f32 %v74, %v57
    %v134 = vmul.f32 %v87, %v133
    %v135 = vadd.f32 %v86, %v134
    %v136 = vmul.f32 %v83, %v57
    %v137 = vadd.f32 %v135, %v136
    %v138 = vmax.f32 %v137, 0.0
    %v139 = vmul.f32 %v83, %v138
    %v140 = vmul.f32 %v74, -2.0
    %v141 = vadd.f32 %v140, 1.0
    %v142 = vmul.f32 %v57, %v78
    %v143 = vadd.f32 %v141, %v142
    %v144 = vmax.f32 %v143, 1e-15
    %v145 = vrsqrt.pop %v139
    %v146 = vmul.f32 %v139, %v145
    %vm147 = vcmp.eq.f32.partialorder %v139, inf
    %v148 = vsel %vm147, %v139, %v146
    %vm149 = vcmp.eq.f32.partialorder %v139, 0.0
    %v150 = vand.u32 %v139, 2147483648
    %v151 = vsel %vm149, %v150, %v148
    %v152 = vrcp.pop %v144
    %v153 = vmul.f32 %v151, %v152
    %v154 = vmax.f32 %v153, 0.0
    %v155 = vmin.f32 %v154, 0.9999999
    %v156 = vadd.f32 %v155, 1.0
    %v157 = vlog2.pop %v156
    %v158 = vmul.f32 %v157, 0.6931472
    %v159 = vmul.f32 -0.5, %v155
    %v160 = vadd.f32 %v159, 1.0
    %v161 = vmul.f32 %v160, %v155
    %v162 = vand.u32 2147483647, %v155
    %vm163 = vcmp.lt.f32.partialorder %v162, 0.0004427343
    %v164 = vsel %vm163, %v161, %v158
    %v165 = vsub.f32 0.0, %v155
    %v166 = vadd.f32 %v165, 1.0
    %v167 = vlog2.pop %v166
    %v168 = vmul.f32 %v167, 0.6931472
    %v169 = vmul.f32 -0.5, %v165
    %v170 = vadd.f32 %v169, 1.0
    %v171 = vmul.f32 %v170, %v165
    %v172 = vand.u32 2147483647, %v165
    %vm173 = vcmp.lt.f32.partialorder %v172, 0.0004427343
    %v174 = vsel %vm173, %v171, %v168
    %v175 = vsub.f32 %v164, %v174
    %v176 = vmul.f32 %v175, 0.5
    %v177 = vmul.f32 %v176, 2.0
    %v178 = vsub.f32 %v132, %v177
    %v179 = vadd.f32 %v178, 1.0
    %v180 = vmax.f32 %v179, 0.0
    %vm181 = vcmask 7168
    %v182 = vsel %vm181, %v180, 0.0
    %183 = vadd.xlane.f32.xlu0 %v182
    %v184 = vpop.xlane.xlu0 %183
    %v185 = vrot.slane %v184, 4
    %v186 = vadd.f32 %v184, %v185
    %v187 = vrot.slane %v186, 2
    %v188 = vadd.f32 %v186, %v187
    %v189 = vrot.slane %v188, 1
    %v190 = vadd.f32 %v188, %v189
    %s191 = vtos %v190
    %v192 = vstv %s191
    %193 = vst [vmem:[#allocation8] sm:$0x1] %v192
    // Predicated region
    $region26: #{tpu_custom_call.1} parent=1 // pred_check
      _
    $region27: #{tpu_custom_call.1} parent=1 // pred_check_branch
      %195 = sbr.rel (0) target = $region29
    $region28: #{tpu_custom_call.1} parent=1 // pred_region
      %s197 = ssub.s32 16, 16
      %198 = vsyncadd [#allocation4], %s197
      %s200 = sshll.u32 [#allocation8], 4
      %s201 = int_to_ptr.vmem [resolvable:$true] %s200
      %203 = dma.vmem_to_hbm [thread:$0]  %s201, 16, %s3, [#allocation4]
    $region29: #{tpu_custom_call.1} parent=1 // pred_fallthru
      _
    // Predicated region
    $region30: #{tpu_custom_call.1} parent=1 // pred_check
      _
    $region31: #{tpu_custom_call.1} parent=1 // pred_check_branch
      %205 = sbr.rel (0) target = $region33
    $region32: #{tpu_custom_call.1} parent=1 // pred_region
      %206 = dma.done [#allocation4], 16
    $region33: #{tpu_custom_call.1} parent=1 // pred_fallthru
      _
    %207 = vsyncpa [#allocation3], 1
    %208 = vsyncpa [#allocation6], 1
    %209 = vsyncpa [#allocation4], 1

</llo_original>
